<compile_context>
chip_gen: v5e
topology: v5e:2x2
jax: 0.10.0
libtpu: 0.0.40
codegen_flags: <defaults>
</compile_context>

<pallas_src>
import numpy as np
import jax
import jax.numpy as jnp
from jax.experimental import pallas as pl
from jax.experimental.pallas import tpu as pltpu


def _silu(x):
    return x * jax.nn.sigmoid(x)


# ----------------------------------------------------------------------------
# Pallas kernels (channels-first: channels on sublanes, spatial on lanes)
# ----------------------------------------------------------------------------
def eps_model_kernel(x_ref, temb_ref, w1t_ref, b1_ref, w2t_ref, b2_ref, o_ref):
    """One batch element per grid step, NCHW-native layout.

    x_ref    : (C, HW)   latent; spatial (multiple of 128) on the lane axis
    temb_ref : (C, 1)    per-channel time-conditioning bias (lane broadcast)
    w1t, b1  : (Dh, C), (Dh, 1)
    w2t, b2  : (C, Dh), (C, 1)
    o_ref    : (C, HW)   predicted noise
    """
    h = _silu(x_ref[...] + temb_ref[...])
    h1 = _silu(jnp.dot(w1t_ref[...], h, preferred_element_type=jnp.float32)
               + b1_ref[...])
    out = jnp.dot(w2t_ref[...], h1, preferred_element_type=jnp.float32) + b2_ref[...]
    o_ref[...] = out.astype(o_ref.dtype)


def q_sample_kernel(sa_ref, sv_ref, x0_ref, eps_ref, o_ref):
    """xt = sqrt(alpha_bar[t]) * x0 + sqrt(1 - alpha_bar[t]) * eps.

    sa_ref/sv_ref : SMEM (B,) f32, precomputed per-batch scales
    x0/eps/o      : (C, HW) lane-dense blocks for the current batch element
    """
    b = pl.program_id(0)
    o_ref[...] = (sa_ref[b] * x0_ref[...]
                  + sv_ref[b] * eps_ref[...]).astype(o_ref.dtype)


# ----------------------------------------------------------------------------
# Model
# ----------------------------------------------------------------------------
class LatentDiffusionPallas:
    def __init__(self, n_channels, d_temb, d_hidden, latent_scaling_factor,
                 n_steps, linear_start, linear_end, key):
        # beta schedule computed in float64 (as in the PyTorch module), stored f32.
        beta = np.linspace(linear_start ** 0.5, linear_end ** 0.5, n_steps,
                           dtype=np.float64) ** 2
        alpha = 1.0 - beta
        alpha_bar = np.cumprod(alpha)
        alpha_bar_prev = np.concatenate([[1.0], alpha_bar[:-1]])

        self.beta = jnp.asarray(beta, jnp.float32)
        self.alpha = jnp.asarray(alpha, jnp.float32)
        self.alpha_bar = jnp.asarray(alpha_bar, jnp.float32)
        self.alpha_bar_prev = jnp.asarray(alpha_bar_prev, jnp.float32)
        self.sigma_ddim = jnp.sqrt(
            (1.0 - self.alpha_bar_prev) / (1.0 - self.alpha_bar)
            * (1.0 - self.alpha_bar / self.alpha_bar_prev))
        self.sigma2 = self.beta
        self.latent_scaling_factor = latent_scaling_factor
        self.n_steps = n_steps

        # Deterministic synthetic eps-model parameters.
        C, Dh = n_channels, d_hidden
        self.d_temb = d_temb
        k0, k1, k2 = jax.random.split(key, 3)
        self.Wt = 0.02 * jax.random.normal(k0, (d_temb, C), jnp.float32)
        self.bt = jnp.zeros((C,), jnp.float32)
        W1 = jax.random.normal(k1, (C, Dh), jnp.float32) / np.sqrt(C)
        W2 = jax.random.normal(k2, (Dh, C), jnp.float32) / np.sqrt(Dh)
        # Channels-first forms used by the kernel (transposed once here).
        self.W1T = jnp.asarray(W1.T)                  # (Dh, C)
        self.b1col = jnp.zeros((Dh, 1), jnp.float32)
        self.W2T = jnp.asarray(W2.T)                  # (C, Dh)
        self.b2col = jnp.zeros((C, 1), jnp.float32)
        # Originals kept for the pure-JAX reference in the demo.
        self.W1, self.W2 = W1, W2
        self.b1 = jnp.zeros((1, Dh), jnp.float32)
        self.b2 = jnp.zeros((1, C), jnp.float32)

    # tiny glue: sinusoidal timestep embedding -> per-channel bias (B, C)
    # TODO(synk): could be folded into the Pallas kernel (t via scalar prefetch,
    #             sin/cos on the otherwise-idle EUP); kept in the wrapper since
    #             it is a (B, d_temb) sized op.
    def _time_embedding(self, t):
        half = self.d_temb // 2
        freqs = jnp.exp(-np.log(10000.0) * jnp.arange(half, dtype=jnp.float32) / half)
        args = t.astype(jnp.float32)[:, None] * freqs[None, :]
        emb = jnp.concatenate([jnp.sin(args), jnp.cos(args)], axis=-1)  # (B, d_temb)
        return emb @ self.Wt + self.bt                                   # (B, C)

    # forward(x, t) == eps_model(x, t)
    def forward(self, x, t):
        B, C, H, W = x.shape
        HW = H * W
        Dh = self.W1T.shape[0]
        xf = x.reshape(B, C, HW)                       # free view, NCHW preserved
        temb = self._time_embedding(t).reshape(B, C, 1)

        out = pl.pallas_call(
            eps_model_kernel,
            out_shape=jax.ShapeDtypeStruct((B, C, HW), x.dtype),
            grid_spec=pltpu.PrefetchScalarGridSpec(
                num_scalar_prefetch=0,
                grid=(B,),
                in_specs=[
                    pl.BlockSpec((None, C, HW), lambda b: (b, 0, 0)),
                    pl.BlockSpec((None, C, 1), lambda b: (b, 0, 0)),
                    # constant block index -> fetched once, not per grid step
                    pl.BlockSpec((Dh, C), lambda b: (0, 0)),
                    pl.BlockSpec((Dh, 1), lambda b: (0, 0)),
                    pl.BlockSpec((C, Dh), lambda b: (0, 0)),
                    pl.BlockSpec((C, 1), lambda b: (0, 0)),
                ],
                out_specs=pl.BlockSpec((None, C, HW), lambda b: (b, 0, 0)),
            ),
            compiler_params=pltpu.CompilerParams(
                dimension_semantics=("parallel",)),
        )(xf, temb, self.W1T, self.b1col, self.W2T, self.b2col)

        return out.reshape(B, C, H, W)

    # q_sample(x0, t, eps); per-batch scales precomputed in the wrapper (B elems)
    def q_sample(self, x0, t, eps):
        B, C, H, W = x0.shape
        HW = H * W
        x0f = x0.reshape(B, C, HW)                     # free views, no transpose
        epsf = eps.reshape(B, C, HW)

        ab = self.alpha_bar[t.astype(jnp.int32)]       # (B,) gather, tiny
        sqrt_ab = jnp.sqrt(ab).astype(jnp.float32)
        sqrt_om = jnp.sqrt(1.0 - ab).astype(jnp.float32)

        out = pl.pallas_call(
            q_sample_kernel,
            out_shape=jax.ShapeDtypeStruct((B, C, HW), x0.dtype),
            grid_spec=pltpu.PrefetchScalarGridSpec(
                num_scalar_prefetch=0,
                grid=(B,),
                in_specs=[
                    pl.BlockSpec(memory_space=pltpu.MemorySpace.SMEM),  # sqrt(ab[t])
                    pl.BlockSpec(memory_space=pltpu.MemorySpace.SMEM),  # sqrt(1-ab[t])
                    pl.BlockSpec((None, C, HW), lambda b: (b, 0, 0)),
                    pl.BlockSpec((None, C, HW), lambda b: (b, 0, 0)),
                ],
                out_specs=pl.BlockSpec((None, C, HW), lambda b: (b, 0, 0)),
            ),
            compiler_params=pltpu.CompilerParams(
                dimension_semantics=("parallel",)),
        )(sqrt_ab, sqrt_om, x0f, epsf)

        return out.reshape(B, C, H, W)


# ----------------------------------------------------------------------------
# Demo
# ----------------------------------------------------------------------------
if __name__ == "__main__":
    key = jax.random.PRNGKey(0)
    k_param, k_x, k_eps, k_t = jax.random.split(key, 4)

    B, C, H, W = 2, 4, 16, 16
    n_steps = 100

    model = LatentDiffusionPallas(
        n_channels=C, d_temb=32, d_hidden=32,
        latent_scaling_factor=0.18215, n_steps=n_steps,
        linear_start=0.00085, linear_end=0.012, key=k_param)

    x = jax.random.normal(k_x, (B, C, H, W), jnp.float32)
    t = jax.random.randint(k_t, (B,), 0, n_steps, dtype=jnp.int32)
    noise = jax.random.normal(k_eps, (B, C, H, W), jnp.float32)

    # forward pass (== eps_model(x, t)) + pure-JAX reference check
    eps_theta = jax.block_until_ready(model.forward(x, t))
    assert eps_theta.shape == x.shape and eps_theta.dtype == x.dtype

    temb = model._time_embedding(t)                       # (B, C)
    hr = _silu(x + temb[:, :, None, None])
    h1r = _silu(jnp.einsum('bchw,cd->bdhw', hr, model.W1,
                           precision=jax.lax.Precision.HIGHEST)
                + model.b1.reshape(1, -1, 1, 1))
    eps_ref = (jnp.einsum('bdhw,dc->bchw', h1r, model.W2,
                          precision=jax.lax.Precision.HIGHEST)
               + model.b2.reshape(1, -1, 1, 1))
    np.testing.assert_allclose(np.asarray(eps_theta), np.asarray(eps_ref),
                               rtol=1e-3, atol=1e-3)

    # q_sample kernel + pure-JAX reference check of the diffusion math
    xt = jax.block_until_ready(model.q_sample(x, t, noise))
    ab = model.alpha_bar[t].reshape(-1, 1, 1, 1)
    xt_ref = jnp.sqrt(ab) * x + jnp.sqrt(1.0 - ab) * noise
    assert xt.shape == x.shape
    np.testing.assert_allclose(np.asarray(xt), np.asarray(xt_ref),
                               rtol=1e-5, atol=1e-5)

    print("KERNEL_OK")
</pallas_src>

<mosaic_0001>
module attributes {stable_mosaic.version = 11 : i64} {
  func.func @eps_model_kernel(%arg0: i32, %arg1: memref<1x4x256xf32, #tpu.memory_space<vmem>>, %arg2: memref<1x4x1xf32, #tpu.memory_space<vmem>>, %arg3: memref<32x4xf32, #tpu.memory_space<vmem>>, %arg4: memref<32x1xf32, #tpu.memory_space<vmem>>, %arg5: memref<4x32xf32, #tpu.memory_space<vmem>>, %arg6: memref<4x1xf32, #tpu.memory_space<vmem>>, %arg7: memref<1x4x256xf32, #tpu.memory_space<vmem>>) attributes {dimension_semantics = [#tpu.dimension_semantics<parallel>], iteration_bounds = array<i64: 2>, scalar_prefetch = 0 : i64, scratch_operands = 0 : i64, tpu.core_type = #tpu.core_type<tc>, window_params = [{transform_indices = @transform_0, window_bounds = array<i64: 1, 4, 256>}, {transform_indices = @transform_1, window_bounds = array<i64: 1, 4, 1>}, {pipeline_mode = #tpu.pipeline_mode<synchronous>, transform_indices = @transform_2, window_bounds = array<i64: 32, 4>}, {pipeline_mode = #tpu.pipeline_mode<synchronous>, transform_indices = @transform_3, window_bounds = array<i64: 32, 1>}, {pipeline_mode = #tpu.pipeline_mode<synchronous>, transform_indices = @transform_4, window_bounds = array<i64: 4, 32>}, {pipeline_mode = #tpu.pipeline_mode<synchronous>, transform_indices = @transform_5, window_bounds = array<i64: 4, 1>}, {transform_indices = @transform_6, window_bounds = array<i64: 1, 4, 256>}]} {
    %c0 = arith.constant 0 : index
    %c0_0 = arith.constant 0 : index
    %c0_1 = arith.constant 0 : index
    %0 = vector.load %arg1[%c0, %c0_0, %c0_1] : memref<1x4x256xf32, #tpu.memory_space<vmem>>, vector<1x4x256xf32>
    %1 = vector.shape_cast %0 : vector<1x4x256xf32> to vector<4x256xf32>
    %c0_2 = arith.constant 0 : index
    %c0_3 = arith.constant 0 : index
    %c0_4 = arith.constant 0 : index
    %2 = vector.load %arg2[%c0_2, %c0_3, %c0_4] : memref<1x4x1xf32, #tpu.memory_space<vmem>>, vector<1x4x1xf32>
    %3 = vector.shape_cast %2 : vector<1x4x1xf32> to vector<4x1xf32>
    %4 = vector.broadcast %3 : vector<4x1xf32> to vector<4x256xf32>
    %5 = arith.addf %1, %4 : vector<4x256xf32>
    %6 = arith.negf %5 : vector<4x256xf32>
    %7 = math.exp %6 : vector<4x256xf32>
    %cst = arith.constant 1.000000e+00 : f32
    %8 = vector.broadcast %cst : f32 to vector<4x256xf32>
    %9 = arith.addf %8, %7 : vector<4x256xf32>
    %10 = arith.divf %8, %9 : vector<4x256xf32>
    %11 = arith.mulf %5, %10 : vector<4x256xf32>
    %c0_5 = arith.constant 0 : index
    %c0_6 = arith.constant 0 : index
    %12 = vector.load %arg3[%c0_5, %c0_6] : memref<32x4xf32, #tpu.memory_space<vmem>>, vector<32x4xf32>
    %cst_7 = arith.constant dense<0.000000e+00> : vector<32x256xf32>
    %13 = tpu.matmul %12, %11, %cst_7 {dimension_numbers = #tpu.dot_dimension_numbers<[1], [0], [0], [1], [0, 0, 1, 1], [], []>} : vector<32x4xf32>, vector<4x256xf32>, vector<32x256xf32> -> vector<32x256xf32>
    %c0_8 = arith.constant 0 : index
    %c0_9 = arith.constant 0 : index
    %14 = vector.load %arg4[%c0_8, %c0_9] : memref<32x1xf32, #tpu.memory_space<vmem>>, vector<32x1xf32>
    %15 = vector.broadcast %14 : vector<32x1xf32> to vector<32x256xf32>
    %16 = arith.addf %13, %15 : vector<32x256xf32>
    %17 = arith.negf %16 : vector<32x256xf32>
    %18 = math.exp %17 : vector<32x256xf32>
    %cst_10 = arith.constant 1.000000e+00 : f32
    %19 = vector.broadcast %cst_10 : f32 to vector<32x256xf32>
    %20 = arith.addf %19, %18 : vector<32x256xf32>
    %21 = arith.divf %19, %20 : vector<32x256xf32>
    %22 = arith.mulf %16, %21 : vector<32x256xf32>
    %c0_11 = arith.constant 0 : index
    %c0_12 = arith.constant 0 : index
    %23 = vector.load %arg5[%c0_11, %c0_12] : memref<4x32xf32, #tpu.memory_space<vmem>>, vector<4x32xf32>
    %cst_13 = arith.constant dense<0.000000e+00> : vector<4x256xf32>
    %24 = tpu.matmul %23, %22, %cst_13 {dimension_numbers = #tpu.dot_dimension_numbers<[1], [0], [0], [1], [0, 0, 1, 1], [], []>} : vector<4x32xf32>, vector<32x256xf32>, vector<4x256xf32> -> vector<4x256xf32>
    %c0_14 = arith.constant 0 : index
    %c0_15 = arith.constant 0 : index
    %25 = vector.load %arg6[%c0_14, %c0_15] : memref<4x1xf32, #tpu.memory_space<vmem>>, vector<4x1xf32>
    %26 = vector.broadcast %25 : vector<4x1xf32> to vector<4x256xf32>
    %27 = arith.addf %24, %26 : vector<4x256xf32>
    %c0_16 = arith.constant 0 : index
    %c0_17 = arith.constant 0 : index
    %c0_18 = arith.constant 0 : index
    %28 = vector.load %arg7[%c0_16, %c0_17, %c0_18] : memref<1x4x256xf32, #tpu.memory_space<vmem>>, vector<1x4x256xf32>
    %29 = vector.shape_cast %28 : vector<1x4x256xf32> to vector<4x256xf32>
    %30 = vector.shape_cast %27 : vector<4x256xf32> to vector<1x4x256xf32>
    tpu.vector_store %arg7[%c0_16, %c0_17, %c0_18], %30 {strides = array<i32>} : memref<1x4x256xf32, #tpu.memory_space<vmem>>, vector<1x4x256xf32>,
    return
  }
  func.func @transform_0(%arg0: i32) -> (i32, i32, i32) {
    %c0_i32 = arith.constant 0 : i32
    %c0_i32_0 = arith.constant 0 : i32
    %c0_i32_1 = arith.constant 0 : i32
    return %arg0, %c0_i32, %c0_i32_0 : i32, i32, i32
  }
  func.func @transform_1(%arg0: i32) -> (i32, i32, i32) {
    %c0_i32 = arith.constant 0 : i32
    %c0_i32_0 = arith.constant 0 : i32
    %c0_i32_1 = arith.constant 0 : i32
    return %arg0, %c0_i32, %c0_i32_0 : i32, i32, i32
  }
  func.func @transform_2(%arg0: i32) -> (i32, i32) {
    %c0_i32 = arith.constant 0 : i32
    %c0_i32_0 = arith.constant 0 : i32
    %c0_i32_1 = arith.constant 0 : i32
    return %c0_i32, %c0_i32_0 : i32, i32
  }
  func.func @transform_3(%arg0: i32) -> (i32, i32) {
    %c0_i32 = arith.constant 0 : i32
    %c0_i32_0 = arith.constant 0 : i32
    %c0_i32_1 = arith.constant 0 : i32
    return %c0_i32, %c0_i32_0 : i32, i32
  }
  func.func @transform_4(%arg0: i32) -> (i32, i32) {
    %c0_i32 = arith.constant 0 : i32
    %c0_i32_0 = arith.constant 0 : i32
    %c0_i32_1 = arith.constant 0 : i32
    return %c0_i32, %c0_i32_0 : i32, i32
  }
  func.func @transform_5(%arg0: i32) -> (i32, i32) {
    %c0_i32 = arith.constant 0 : i32
    %c0_i32_0 = arith.constant 0 : i32
    %c0_i32_1 = arith.constant 0 : i32
    return %c0_i32, %c0_i32_0 : i32, i32
  }
  func.func @transform_6(%arg0: i32) -> (i32, i32, i32) {
    %c0_i32 = arith.constant 0 : i32
    %c0_i32_0 = arith.constant 0 : i32
    %c0_i32_1 = arith.constant 0 : i32
    return %arg0, %c0_i32, %c0_i32_0 : i32, i32, i32
  }
}

</mosaic_0001>

<llo_original>
// kernel: tpu_custom_call.1
$region0: #{tpu_custom_call.1}
  #allocation0 [shape = 'u32[]', space=smem, size = 0x4, offset = 0x4, fixed_abs, tag = 'smem constant byte address 0x4 - core index']
  #allocation1 [shape = 'u32[72,128]{1,0:T(1,128)}', space=vmem, size = 0x9000, scoped, tag = 'internal scratch']
  %s0 = inlined_call_operand.vmem [shape: f32[2,4,256], index: 0, kind: input, shape index: {}]
  %s1 = inlined_call_operand.vmem [shape: f32[2,4,1], index: 1, kind: input, shape index: {}]
  %s2 = inlined_call_operand.vmem [shape: f32[32,4], index: 2, kind: input, shape index: {}]
  %s3 = inlined_call_operand.vmem [shape: f32[32,1], index: 3, kind: input, shape index: {}]
  %s4 = inlined_call_operand.vmem [shape: f32[4,32], index: 4, kind: input, shape index: {}]
  %s5 = inlined_call_operand.vmem [shape: f32[4,1], index: 5, kind: input, shape index: {}]
  %s6 = inlined_call_operand.hbm [shape: f32[2,4,256], index: 6, kind: output, shape index: {}]
  %s7 = sld [smem:[#allocation0]]
  $region57: #{tpu_custom_call.1} parent=0
    _
  %s9 = ssub.s32 1, %s7
  %s10 = scalar_select 0, %s9, %s7
  $region1: #{tpu_custom_call.1} parent=0
    #allocation2 [shape = 'u8[8192]{0}', space=vmem, size = 0x2000, scoped, tag = 'output window, operand 0']
    #allocation3 [shape = 's32[2]{0}', space=sflag, size = 0x8, scoped, tag = 'scoped memory for tpu_custom_call.1']
    %11 = vsyncpa [#allocation3], 0
    %s12 = scalar_lea.sflag [#allocation3], 1
    %13 = vsyncpa %s12, 0
    loop: start=0, step=1, limit=4
    $region2: #{tpu_custom_call.1} parent=1 // loop_pre_header
      _
    $region3: #{tpu_custom_call.1} parent=1 // loop_header
      %s15 = sphi 0, %s19
      %p16 = scmp.ge.s32.totalorder %s15, 4
      %s25 = sphi 0, %s27
      %s28 = sphi 0, %s25
      %s29 = sphi 0, %s28
      %s45 = sphi 0, %s29
      %s51 = sphi 0, %s53
      %s54 = sphi 0, %s51
      %s55 = sphi 0, %s54
      %s71 = sphi 0, %s55
      %s75 = sphi 0, %s75
      %s77 = sphi 0, %s75
      %s78 = sphi 0, %s77
      %s92 = sphi 0, %s78
      %s96 = sphi 0, %s96
      %s98 = sphi 0, %s96
      %s99 = sphi 0, %s98
      %s113 = sphi 0, %s99
      %s117 = sphi 0, %s117
      %s119 = sphi 0, %s117
      %s120 = sphi 0, %s119
      %s134 = sphi 0, %s120
      %s138 = sphi 0, %s138
      %s140 = sphi 0, %s138
      %s141 = sphi 0, %s140
      %s155 = sphi 0, %s141
      %s161 = sphi 0, %s163
      %s164 = sphi 0, %s161
      %s165 = sphi 0, %s164
      %s181 = sphi 0, %s165
    $region4: #{tpu_custom_call.1} parent=1 // loop_header_branch
      %18 = sbr.rel (%p16) target = $region8
    $region5: #{tpu_custom_call.1} parent=1 // loop_body
      %s20 = ssub.s32 %s15, 1
      %s21 = ssub.s32 %s15, 2
      %s22 = sadd.s32 %s15, 1
      %s23 = ssub.s32 %s15, %s22
      %p24 = scmp.eq.s32.totalorder %s23, 0
      %s26 = sadd.s32 %s25, 1
      %s27 = scalar_select %p24, %s25, %s26
      %p30 = pneg %p24
      %p31 = scmp.eq.s32.totalorder %s15, 1
      %p32 = por %p30, %p31
      %p33 = scmp.ne.s32.totalorder %s25, %s28
      %p34 = scmp.eq.s32.totalorder %s15, 0
      %p35 = por %p33, %p34
      %p36 = scmp.ne.s32.totalorder %s25, %s28
      %p37 = scmp.eq.s32.totalorder %s20, 1
      %p38 = por %p36, %p37
      %p39 = scmp.ne.s32.totalorder %s28, %s29
      %p40 = scmp.eq.s32.totalorder %s20, 0
      %p41 = por %p39, %p40
      %p42 = scmp.ne.s32.totalorder %s28, %s29
      %p43 = scmp.eq.s32.totalorder %s21, 1
      %p44 = por %p42, %p43
      %p46 = scmp.ne.s32.totalorder %s29, %s45
      %p47 = scmp.eq.s32.totalorder %s21, 0
      %p48 = por %p46, %p47
      %s49 = ssub.s32 %s15, %s22
      %p50 = scmp.eq.s32.totalorder %s49, 0
      %s52 = sadd.s32 %s51, 1
      %s53 = scalar_select %p50, %s51, %s52
      %p56 = pneg %p50
      %p57 = scmp.eq.s32.totalorder %s15, 1
      %p58 = por %p56, %p57
      %p59 = scmp.ne.s32.totalorder %s51, %s54
      %p60 = scmp.eq.s32.totalorder %s15, 0
      %p61 = por %p59, %p60
      %p62 = scmp.ne.s32.totalorder %s51, %s54
      %p63 = scmp.eq.s32.totalorder %s20, 1
      %p64 = por %p62, %p63
      %p65 = scmp.ne.s32.totalorder %s54, %s55
      %p66 = scmp.eq.s32.totalorder %s20, 0
      %p67 = por %p65, %p66
      %p68 = scmp.ne.s32.totalorder %s54, %s55
      %p69 = scmp.eq.s32.totalorder %s21, 1
      %p70 = por %p68, %p69
      %p72 = scmp.ne.s32.totalorder %s55, %s71
      %p73 = scmp.eq.s32.totalorder %s21, 0
      %p74 = por %p72, %p73
      %s76 = sadd.s32 %s75, 1
      %p79 = scmp.eq.s32.totalorder %s15, 1
      %p80 = scmp.ne.s32.totalorder %s75, %s77
      %p81 = scmp.eq.s32.totalorder %s15, 0
      %p82 = por %p80, %p81
      %p83 = scmp.ne.s32.totalorder %s75, %s77
      %p84 = scmp.eq.s32.totalorder %s20, 1
      %p85 = por %p83, %p84
      %p86 = scmp.ne.s32.totalorder %s77, %s78
      %p87 = scmp.eq.s32.totalorder %s20, 0
      %p88 = por %p86, %p87
      %p89 = scmp.ne.s32.totalorder %s77, %s78
      %p90 = scmp.eq.s32.totalorder %s21, 1
      %p91 = por %p89, %p90
      %p93 = scmp.ne.s32.totalorder %s78, %s92
      %p94 = scmp.eq.s32.totalorder %s21, 0
      %p95 = por %p93, %p94
      %s97 = sadd.s32 %s96, 1
      %p100 = scmp.eq.s32.totalorder %s15, 1
      %p101 = scmp.ne.s32.totalorder %s96, %s98
      %p102 = scmp.eq.s32.totalorder %s15, 0
      %p103 = por %p101, %p102
      %p104 = scmp.ne.s32.totalorder %s96, %s98
      %p105 = scmp.eq.s32.totalorder %s20, 1
      %p106 = por %p104, %p105
      %p107 = scmp.ne.s32.totalorder %s98, %s99
      %p108 = scmp.eq.s32.totalorder %s20, 0
      %p109 = por %p107, %p108
      %p110 = scmp.ne.s32.totalorder %s98, %s99
      %p111 = scmp.eq.s32.totalorder %s21, 1
      %p112 = por %p110, %p111
      %p114 = scmp.ne.s32.totalorder %s99, %s113
      %p115 = scmp.eq.s32.totalorder %s21, 0
      %p116 = por %p114, %p115
      %s118 = sadd.s32 %s117, 1
      %p121 = scmp.eq.s32.totalorder %s15, 1
      %p122 = scmp.ne.s32.totalorder %s117, %s119
      %p123 = scmp.eq.s32.totalorder %s15, 0
      %p124 = por %p122, %p123
      %p125 = scmp.ne.s32.totalorder %s117, %s119
      %p126 = scmp.eq.s32.totalorder %s20, 1
      %p127 = por %p125, %p126
      %p128 = scmp.ne.s32.totalorder %s119, %s120
      %p129 = scmp.eq.s32.totalorder %s20, 0
      %p130 = por %p128, %p129
      %p131 = scmp.ne.s32.totalorder %s119, %s120
      %p132 = scmp.eq.s32.totalorder %s21, 1
      %p133 = por %p131, %p132
      %p135 = scmp.ne.s32.totalorder %s120, %s134
      %p136 = scmp.eq.s32.totalorder %s21, 0
      %p137 = por %p135, %p136
      %s139 = sadd.s32 %s138, 1
      %p142 = scmp.eq.s32.totalorder %s15, 1
      %p143 = scmp.ne.s32.totalorder %s138, %s140
      %p144 = scmp.eq.s32.totalorder %s15, 0
      %p145 = por %p143, %p144
      %p146 = scmp.ne.s32.totalorder %s138, %s140
      %p147 = scmp.eq.s32.totalorder %s20, 1
      %p148 = por %p146, %p147
      %p149 = scmp.ne.s32.totalorder %s140, %s141
      %p150 = scmp.eq.s32.totalorder %s20, 0
      %p151 = por %p149, %p150
      %p152 = scmp.ne.s32.totalorder %s140, %s141
      %p153 = scmp.eq.s32.totalorder %s21, 1
      %p154 = por %p152, %p153
      %p156 = scmp.ne.s32.totalorder %s141, %s155
      %p157 = scmp.eq.s32.totalorder %s21, 0
      %p158 = por %p156, %p157
      %s159 = ssub.s32 %s15, %s22
      %p160 = scmp.eq.s32.totalorder %s159, 0
      %s162 = sadd.s32 %s161, 1
      %s163 = scalar_select %p160, %s161, %s162
      %p166 = pneg %p160
      %p167 = scmp.eq.s32.totalorder %s15, 1
      %p168 = por %p166, %p167
      %p169 = scmp.ne.s32.totalorder %s161, %s164
      %p170 = scmp.eq.s32.totalorder %s15, 0
      %p171 = por %p169, %p170
      %p172 = scmp.ne.s32.totalorder %s161, %s164
      %p173 = scmp.eq.s32.totalorder %s20, 1
      %p174 = por %p172, %p173
      %p175 = scmp.ne.s32.totalorder %s164, %s165
      %p176 = scmp.eq.s32.totalorder %s20, 0
      %p177 = por %p175, %p176
      %p178 = scmp.ne.s32.totalorder %s164, %s165
      %p179 = scmp.eq.s32.totalorder %s21, 1
      %p180 = por %p178, %p179
      %p182 = scmp.ne.s32.totalorder %s165, %s181
      %p183 = scmp.eq.s32.totalorder %s21, 0
      %p184 = por %p182, %p183
      %p185 = scmp.le.s32.totalorder 1, %s15
      %p186 = scmp.lt.s32.totalorder %s15, 3
      %p187 = pnand %p185, %p186
      %p188 = pneg %p187
      // Predicated region
      $region9: #{tpu_custom_call.1} parent=5 // pred_check
        _
      $region10: #{tpu_custom_call.1} parent=5 // pred_check_branch
        %190 = sbr.rel (%p187) target = $region12
      $region11: #{tpu_custom_call.1} parent=5 // pred_region
        %s191 = ssub.s32 %s15, 1
        // Predicated region
        $region13: #{tpu_custom_call.1} parent=11 // pred_check
          %p192 = pneg %p88
        $region14: #{tpu_custom_call.1} parent=11 // pred_check_branch
          %194 = sbr.rel (%p192) target = $region16
        $region15: #{tpu_custom_call.1} parent=11 // pred_region
          _
        $region16: #{tpu_custom_call.1} parent=11 // pred_fallthru
          _
        // Predicated region
        $region17: #{tpu_custom_call.1} parent=11 // pred_check
          %p195 = pneg %p109
        $region18: #{tpu_custom_call.1} parent=11 // pred_check_branch
          %197 = sbr.rel (%p195) target = $region20
        $region19: #{tpu_custom_call.1} parent=11 // pred_region
          _
        $region20: #{tpu_custom_call.1} parent=11 // pred_fallthru
          _
        // Predicated region
        $region21: #{tpu_custom_call.1} parent=11 // pred_check
          %p198 = pneg %p130
        $region22: #{tpu_custom_call.1} parent=11 // pred_check_branch
          %200 = sbr.rel (%p198) target = $region24
        $region23: #{tpu_custom_call.1} parent=11 // pred_region
          _
        $region24: #{tpu_custom_call.1} parent=11 // pred_fallthru
          _
        // Predicated region
        $region25: #{tpu_custom_call.1} parent=11 // pred_check
          %p201 = pneg %p151
        $region26: #{tpu_custom_call.1} parent=11 // pred_check_branch
          %203 = sbr.rel (%p201) target = $region28
        $region27: #{tpu_custom_call.1} parent=11 // pred_region
          _
        $region28: #{tpu_custom_call.1} parent=11 // pred_fallthru
          _
      $region12: #{tpu_custom_call.1} parent=5 // pred_fallthru
        _
      %p204 = scmp.lt.s32.totalorder %s15, 2
      // Predicated region
      $region29: #{tpu_custom_call.1} parent=5 // pred_check
        %p205 = pneg %p204
      $region30: #{tpu_custom_call.1} parent=5 // pred_check_branch
        %207 = sbr.rel (%p205) target = $region32
      $region31: #{tpu_custom_call.1} parent=5 // pred_region
        // Predicated region
        $region33: #{tpu_custom_call.1} parent=31 // pred_check
          %p208 = pneg %p35
        $region34: #{tpu_custom_call.1} parent=31 // pred_check_branch
          %210 = sbr.rel (%p208) target = $region36
        $region35: #{tpu_custom_call.1} parent=31 // pred_region
          %p211 = scmp.lt.s32.totalorder %s15, 1
          %s212 = scalar_select %p211, %s15, 1
          %s213 = smul.addr %s212, 2
          %s214 = smul.addr %s213, 4
          %s215 = scalar_lea.vmem %s0, %s214
        $region36: #{tpu_custom_call.1} parent=31 // pred_fallthru
          _
        // Predicated region
        $region37: #{tpu_custom_call.1} parent=31 // pred_check
          %p216 = pneg %p61
        $region38: #{tpu_custom_call.1} parent=31 // pred_check_branch
          %218 = sbr.rel (%p216) target = $region40
        $region39: #{tpu_custom_call.1} parent=31 // pred_region
          %p219 = scmp.lt.s32.totalorder %s15, 1
          %s220 = scalar_select %p219, %s15, 1
          %s221 = smul.addr %s220, 4
          %s222 = scalar_lea.vmem %s1, %s221
        $region40: #{tpu_custom_call.1} parent=31 // pred_fallthru
          _
      $region32: #{tpu_custom_call.1} parent=5 // pred_fallthru
        _
      %p223 = scmp.le.s32.totalorder 1, %s15
      %p224 = scmp.lt.s32.totalorder %s15, 3
      %p225 = pnand %p223, %p224
      %p226 = pneg %p225
      // Predicated region
      $region41: #{tpu_custom_call.1} parent=5 // pred_check
        _
      $region42: #{tpu_custom_call.1} parent=5 // pred_check_branch
        %228 = sbr.rel (%p225) target = $region44
      $region43: #{tpu_custom_call.1} parent=5 // pred_region
        %s229 = ssub.s32 %s15, 1
        %p230 = scmp.lt.s32.totalorder %s20, 1
        %s231 = scalar_select %p230, %s20, 1
        %s232 = smul.addr %s231, 2
        %s233 = smul.addr %s232, 4
        %s234 = scalar_lea.vmem %s0, %s233
        %p235 = pneg %p41
        %p236 = pneg %p38
        %p237 = scmp.lt.s32.totalorder %s20, 1
        %s238 = scalar_select %p237, %s20, 1
        %s239 = smul.addr %s238, 4
        %s240 = scalar_lea.vmem %s1, %s239
        %p241 = pneg %p67
        %p242 = pneg %p64
        %p243 = pneg %p88
        %p244 = pneg %p85
        %p245 = pneg %p109
        %p246 = pneg %p106
        %p247 = pneg %p130
        %p248 = pneg %p127
        %p249 = pneg %p151
        %p250 = pneg %p148
        %p251 = pneg %p177
        %p252 = pneg %p174
        %s253 = sand.u32 %s164, 1
        %s254 = scalar_lea.sflag [#allocation3], %s253
        %s255 = sand.u32 %s164, 1
        %s256 = smul.addr %s255, 8
        %s257 = scalar_lea.vmem [#allocation2], %s256
        %p258 = scmp.lt.s32.totalorder %s20, 1
        %s259 = scalar_select %p258, %s20, 1
        %s260 = smul.addr %s259, 2
        %s261 = smul.addr %s260, 4
        %s262 = scalar_lea.vmem %s0, %s261
        %p263 = scmp.lt.s32.totalorder %s20, 1
        %s264 = scalar_select %p263, %s20, 1
        %s265 = smul.addr %s264, 4
        %s266 = scalar_lea.vmem %s1, %s265
        %v267 = vld [vmem:[%s262] sm:$0xff]
        %v268 = vld [vmem:[%s266] sm:$0xf]
        %270 = vset.pattern.permute.xlu0 0
        %271 = vperm.xlu0 %270, %v268
        %v272 = vpop.permute.xlu0 %271
        %v274 = vunpack.c.l.s4 839922192
        %v275 = vunpack.c.0.s8 %v274
        %v276 = vperm.slane %v272, %v275
        %v278 = vadd.f32 %v267, %v276
        %v279 = vxor.u32 %v278, 2147483648
        %v280 = vmul.f32 %v279, 1.442695
        %v281 = vpow.pop %v280
        %v282 = vadd.f32 %v281, 1.0
        %v283 = vrcp.pop %v282
        %v284 = vmul.f32 %v282, %v283
        %v285 = vsub.f32 1.0, %v284
        %v286 = vmul.f32 %v283, %v285
        %v287 = vadd.f32 %v283, %v286
        %vm288 = vweird.f32 %v282
        %vm289 = vweird.f32 %v283
        %vm290 = vmor %vm288, %vm289
        %v291 = vsel %vm290, %v283, %v287
        %v292 = vand.u32 2147483647, %v282
        %vm293 = vcmp.eq.f32.partialorder %v292, 8.507059e+37
        %v294 = vand.u32 %v282, 2147483648
        %v295 = vor.u32 1.1754944e-38, %v294
        %v296 = vsel %vm293, %v295, %v291
        %v297 = vmul.f32 1.0, %v296
        %v298 = vmul.f32 %v278, %v297
        %v299 = vld [vmem:[%s2] sm:$0xff]
        %v300 = vld [vmem:[%s2 + $0x8] sm:$0xff]
        %v301 = vld [vmem:[%s2 + $0x10] sm:$0xff]
        %v302 = vld [vmem:[%s2 + $0x18] sm:$0xff]
        %v303 = vld [vmem:[%s3] sm:$0xff]
        %v304 = vld [vmem:[%s3 + $0x8] sm:$0xff]
        %v305 = vld [vmem:[%s3 + $0x10] sm:$0xff]
        %v306 = vld [vmem:[%s3 + $0x18] sm:$0xff]
        %308 = vset.pattern.permute.xlu0 0
        %309 = vperm.xlu0 %308, %v303
        %v310 = vpop.permute.xlu0 %309
        %313 = vset.pattern.permute.xlu0 0
        %314 = vperm.xlu0 %313, %v304
        %v315 = vpop.permute.xlu0 %314
        %318 = vset.pattern.permute.xlu0 0
        %319 = vperm.xlu0 %318, %v305
        %v320 = vpop.permute.xlu0 %319
        %323 = vset.pattern.permute.xlu0 0
        %324 = vperm.xlu0 %323, %v306
        %v325 = vpop.permute.xlu0 %324
        %328 = vst [vmem:[#allocation1] ss:$2 sm:$0xff] %v298
        %v329 = vld.sshfl [vmem:[#allocation1] sm:$0xff pattern:$0x75316420]
        %v330 = vld.sshfl [vmem:[#allocation1 + $0x8] sm:$0xff pattern:$0x75316420]
        %vm331 = vcmask 31744
        %v333 = vsel %vm331, %v299, 0
        %v336 = vsel %vm331, %v300, 0
        %v339 = vsel %vm331, %v301, 0
        %v342 = vsel %vm331, %v302, 0
        %vm344 = vcmask 1043456
        %v345 = vsel %vm344, %v329, 0
        %v347 = vsel %vm344, %v330, 0
        %349 = vmatpush.msra.mxu0 0.0
        %350 = vmatpush.msra.mxu0 0.0
        %351 = vmatpush.msra.mxu0 0.0
        %352 = vmatpush.msra.mxu0 0.0
        %353 = vmatpush.msra.mxu0 0.0
        %354 = vmatpush.msra.mxu0 0.0
        %355 = vmatpush.msra.mxu0 0.0
        %356 = vmatpush.msra.mxu0 0.0
        %357 = vmatpush.msra.mxu0 0.0
        %358 = vmatpush.msra.mxu0 0.0
        %359 = vmatpush.msra.mxu0 0.0
        %360 = vmatpush.msra.mxu0 0.0
        %361 = vmatpush.msra.mxu0 0.0
        %362 = vmatpush.msra.mxu0 0.0
        %363 = vmatpush.msra.mxu0 0.0
        %364 = vmatpush.msra.mxu0 %v345
        %365 = vmatmul.f32.gmra.mxu0 %v333
        %v366 = vpop.f32.mrf.mxu0
        %v367 = vadd.f32 %v310, %v366
        %368 = vmatmul.f32.gmra.mxu0 %v336
        %v369 = vpop.f32.mrf.mxu0
        %v370 = vadd.f32 %v315, %v369
        %371 = vmatmul.f32.gmra.mxu0 %v339
        %v372 = vpop.f32.mrf.mxu0
        %v373 = vadd.f32 %v320, %v372
        %374 = vmatmul.f32.gmra.mxu0 %v342
        %v375 = vpop.f32.mrf.mxu0
        %v376 = vadd.f32 %v325, %v375
        %377 = vdwg.mxu0
        %378 = vmatpush.msra.mxu0 0.0
        %379 = vmatpush.msra.mxu0 0.0
        %380 = vmatpush.msra.mxu0 0.0
        %381 = vmatpush.msra.mxu0 0.0
        %382 = vmatpush.msra.mxu0 0.0
        %383 = vmatpush.msra.mxu0 0.0
        %384 = vmatpush.msra.mxu0 0.0
        %385 = vmatpush.msra.mxu0 0.0
        %386 = vmatpush.msra.mxu0 0.0
        %387 = vmatpush.msra.mxu0 0.0
        %388 = vmatpush.msra.mxu0 0.0
        %389 = vmatpush.msra.mxu0 0.0
        %390 = vmatpush.msra.mxu0 0.0
        %391 = vmatpush.msra.mxu0 0.0
        %392 = vmatpush.msra.mxu0 0.0
        %393 = vmatpush.msra.mxu0 %v347
        %394 = vmatmul.f32.gmra.mxu0 %v333
        %v395 = vpop.f32.mrf.mxu0
        %v396 = vadd.f32 %v310, %v395
        %397 = vmatmul.f32.gmra.mxu0 %v336
        %v398 = vpop.f32.mrf.mxu0
        %v399 = vadd.f32 %v315, %v398
        %400 = vmatmul.f32.gmra.mxu0 %v339
        %v401 = vpop.f32.mrf.mxu0
        %v402 = vadd.f32 %v320, %v401
        %403 = vmatmul.f32.gmra.mxu0 %v342
        %v404 = vpop.f32.mrf.mxu0
        %v405 = vadd.f32 %v325, %v404
        %406 = vdwg.mxu0
        %v407 = vxor.u32 %v367, 2147483648
        %v408 = vxor.u32 %v396, 2147483648
        %v409 = vxor.u32 %v370, 2147483648
        %v410 = vxor.u32 %v399, 2147483648
        %v411 = vxor.u32 %v373, 2147483648
        %v412 = vxor.u32 %v402, 2147483648
        %v413 = vxor.u32 %v376, 2147483648
        %v414 = vxor.u32 %v405, 2147483648
        %v415 = vmul.f32 %v407, 1.442695
        %v416 = vpow.pop %v415
        %v417 = vmul.f32 %v408, 1.442695
        %v418 = vpow.pop %v417
        %v419 = vmul.f32 %v409, 1.442695
        %v420 = vpow.pop %v419
        %v421 = vmul.f32 %v410, 1.442695
        %v422 = vpow.pop %v421
        %v423 = vmul.f32 %v411, 1.442695
        %v424 = vpow.pop %v423
        %v425 = vmul.f32 %v412, 1.442695
        %v426 = vpow.pop %v425
        %v427 = vmul.f32 %v413, 1.442695
        %v428 = vpow.pop %v427
        %v429 = vmul.f32 %v414, 1.442695
        %v430 = vpow.pop %v429
        %v431 = vadd.f32 %v416, 1.0
        %v432 = vadd.f32 %v418, 1.0
        %v433 = vadd.f32 %v420, 1.0
        %v434 = vadd.f32 %v422, 1.0
        %v435 = vadd.f32 %v424, 1.0
        %v436 = vadd.f32 %v426, 1.0
        %v437 = vadd.f32 %v428, 1.0
        %v438 = vadd.f32 %v430, 1.0
        %v439 = vrcp.pop %v431
        %v440 = vmul.f32 %v431, %v439
        %v441 = vsub.f32 1.0, %v440
        %v442 = vmul.f32 %v439, %v441
        %v443 = vadd.f32 %v439, %v442
        %vm444 = vweird.f32 %v431
        %vm445 = vweird.f32 %v439
        %vm446 = vmor %vm444, %vm445
        %v447 = vsel %vm446, %v439, %v443
        %v448 = vand.u32 2147483647, %v431
        %vm449 = vcmp.eq.f32.partialorder %v448, 8.507059e+37
        %v450 = vand.u32 %v431, 2147483648
        %v451 = vor.u32 1.1754944e-38, %v450
        %v452 = vsel %vm449, %v451, %v447
        %v453 = vmul.f32 1.0, %v452
        %v454 = vrcp.pop %v432
        %v455 = vmul.f32 %v432, %v454
        %v456 = vsub.f32 1.0, %v455
        %v457 = vmul.f32 %v454, %v456
        %v458 = vadd.f32 %v454, %v457
        %vm459 = vweird.f32 %v432
        %vm460 = vweird.f32 %v454
        %vm461 = vmor %vm459, %vm460
        %v462 = vsel %vm461, %v454, %v458
        %v463 = vand.u32 2147483647, %v432
        %vm464 = vcmp.eq.f32.partialorder %v463, 8.507059e+37
        %v465 = vand.u32 %v432, 2147483648
        %v466 = vor.u32 1.1754944e-38, %v465
        %v467 = vsel %vm464, %v466, %v462
        %v468 = vmul.f32 1.0, %v467
        %v469 = vrcp.pop %v433
        %v470 = vmul.f32 %v433, %v469
        %v471 = vsub.f32 1.0, %v470
        %v472 = vmul.f32 %v469, %v471
        %v473 = vadd.f32 %v469, %v472
        %vm474 = vweird.f32 %v433
        %vm475 = vweird.f32 %v469
        %vm476 = vmor %vm474, %vm475
        %v477 = vsel %vm476, %v469, %v473
        %v478 = vand.u32 2147483647, %v433
        %vm479 = vcmp.eq.f32.partialorder %v478, 8.507059e+37
        %v480 = vand.u32 %v433, 2147483648
        %v481 = vor.u32 1.1754944e-38, %v480
        %v482 = vsel %vm479, %v481, %v477
        %v483 = vmul.f32 1.0, %v482
        %v484 = vrcp.pop %v434
        %v485 = vmul.f32 %v434, %v484
        %v486 = vsub.f32 1.0, %v485
        %v487 = vmul.f32 %v484, %v486
        %v488 = vadd.f32 %v484, %v487
        %vm489 = vweird.f32 %v434
        %vm490 = vweird.f32 %v484
        %vm491 = vmor %vm489, %vm490
        %v492 = vsel %vm491, %v484, %v488
        %v493 = vand.u32 2147483647, %v434
        %vm494 = vcmp.eq.f32.partialorder %v493, 8.507059e+37
        %v495 = vand.u32 %v434, 2147483648
        %v496 = vor.u32 1.1754944e-38, %v495
        %v497 = vsel %vm494, %v496, %v492
        %v498 = vmul.f32 1.0, %v497
        %v499 = vrcp.pop %v435
        %v500 = vmul.f32 %v435, %v499
        %v501 = vsub.f32 1.0, %v500
        %v502 = vmul.f32 %v499, %v501
        %v503 = vadd.f32 %v499, %v502
        %vm504 = vweird.f32 %v435
        %vm505 = vweird.f32 %v499
        %vm506 = vmor %vm504, %vm505
        %v507 = vsel %vm506, %v499, %v503
        %v508 = vand.u32 2147483647, %v435
        %vm509 = vcmp.eq.f32.partialorder %v508, 8.507059e+37
        %v510 = vand.u32 %v435, 2147483648
        %v511 = vor.u32 1.1754944e-38, %v510
        %v512 = vsel %vm509, %v511, %v507
        %v513 = vmul.f32 1.0, %v512
        %v514 = vrcp.pop %v436
        %v515 = vmul.f32 %v436, %v514
        %v516 = vsub.f32 1.0, %v515
        %v517 = vmul.f32 %v514, %v516
        %v518 = vadd.f32 %v514, %v517
        %vm519 = vweird.f32 %v436
        %vm520 = vweird.f32 %v514
        %vm521 = vmor %vm519, %vm520
        %v522 = vsel %vm521, %v514, %v518
        %v523 = vand.u32 2147483647, %v436
        %vm524 = vcmp.eq.f32.partialorder %v523, 8.507059e+37
        %v525 = vand.u32 %v436, 2147483648
        %v526 = vor.u32 1.1754944e-38, %v525
        %v527 = vsel %vm524, %v526, %v522
        %v528 = vmul.f32 1.0, %v527
        %v529 = vrcp.pop %v437
        %v530 = vmul.f32 %v437, %v529
        %v531 = vsub.f32 1.0, %v530
        %v532 = vmul.f32 %v529, %v531
        %v533 = vadd.f32 %v529, %v532
        %vm534 = vweird.f32 %v437
        %vm535 = vweird.f32 %v529
        %vm536 = vmor %vm534, %vm535
        %v537 = vsel %vm536, %v529, %v533
        %v538 = vand.u32 2147483647, %v437
        %vm539 = vcmp.eq.f32.partialorder %v538, 8.507059e+37
        %v540 = vand.u32 %v437, 2147483648
        %v541 = vor.u32 1.1754944e-38, %v540
        %v542 = vsel %vm539, %v541, %v537
        %v543 = vmul.f32 1.0, %v542
        %v544 = vrcp.pop %v438
        %v545 = vmul.f32 %v438, %v544
        %v546 = vsub.f32 1.0, %v545
        %v547 = vmul.f32 %v544, %v546
        %v548 = vadd.f32 %v544, %v547
        %vm549 = vweird.f32 %v438
        %vm550 = vweird.f32 %v544
        %vm551 = vmor %vm549, %vm550
        %v552 = vsel %vm551, %v544, %v548
        %v553 = vand.u32 2147483647, %v438
        %vm554 = vcmp.eq.f32.partialorder %v553, 8.507059e+37
        %v555 = vand.u32 %v438, 2147483648
        %v556 = vor.u32 1.1754944e-38, %v555
        %v557 = vsel %vm554, %v556, %v552
        %v558 = vmul.f32 1.0, %v557
        %v559 = vmul.f32 %v367, %v453
        %v560 = vmul.f32 %v396, %v468
        %v561 = vmul.f32 %v370, %v483
        %v562 = vmul.f32 %v399, %v498
        %v563 = vmul.f32 %v373, %v513
        %v564 = vmul.f32 %v402, %v528
        %v565 = vmul.f32 %v376, %v543
        %v566 = vmul.f32 %v405, %v558
        %v567 = vld [vmem:[%s4] sm:$0xf]
        %v568 = vld [vmem:[%s5] sm:$0xf]
        %570 = vset.pattern.permute.xlu0 0
        %571 = vperm.xlu0 %570, %v568
        %v572 = vpop.permute.xlu0 %571
        %vm574 = vcmask 261120
        %v576 = vsel %vm574, %v567, 0
        %578 = vmatpush.msra.mxu0 0.0
        %579 = vmatpush.msra.mxu0 0.0
        %580 = vmatpush.msra.mxu0 0.0
        %581 = vmatpush.msra.mxu0 0.0
        %582 = vmatpush.msra.mxu0 0.0
        %583 = vmatpush.msra.mxu0 0.0
        %584 = vmatpush.msra.mxu0 0.0
        %585 = vmatpush.msra.mxu0 0.0
        %586 = vmatpush.msra.mxu0 0.0
        %587 = vmatpush.msra.mxu0 0.0
        %588 = vmatpush.msra.mxu0 0.0
        %589 = vmatpush.msra.mxu0 0.0
        %590 = vmatpush.msra.mxu0 %v565
        %591 = vmatpush.msra.mxu0 %v563
        %592 = vmatpush.msra.mxu0 %v561
        %593 = vmatpush.msra.mxu0 %v559
        %594 = vmatmul.f32.gmra.mxu0 %v576
        %v595 = vpop.f32.mrf.mxu0
        %v596 = vadd.f32 %v572, %v595
        %597 = vdwg.mxu0
        %598 = vmatpush.msra.mxu0 0.0
        %599 = vmatpush.msra.mxu0 0.0
        %600 = vmatpush.msra.mxu0 0.0
        %601 = vmatpush.msra.mxu0 0.0
        %602 = vmatpush.msra.mxu0 0.0
        %603 = vmatpush.msra.mxu0 0.0
        %604 = vmatpush.msra.mxu0 0.0
        %605 = vmatpush.msra.mxu0 0.0
        %606 = vmatpush.msra.mxu0 0.0
        %607 = vmatpush.msra.mxu0 0.0
        %608 = vmatpush.msra.mxu0 0.0
        %609 = vmatpush.msra.mxu0 0.0
        %610 = vmatpush.msra.mxu0 %v566
        %611 = vmatpush.msra.mxu0 %v564
        %612 = vmatpush.msra.mxu0 %v562
        %613 = vmatpush.msra.mxu0 %v560
        %614 = vmatmul.f32.gmra.mxu0 %v576
        %v615 = vpop.f32.mrf.mxu0
        %v616 = vadd.f32 %v572, %v615
        %617 = vdwg.mxu0
        %v620 = vrot.slane %v616, 4
        %v621 = vsel %vm344, %v596, %v620
        %623 = vst [vmem:[%s257] sm:$0xff] %v621
        %s624 = sand.u32 %s164, 1
        %s625 = scalar_lea.sflag [#allocation3], %s624
        %s626 = sand.u32 %s164, 1
        %s627 = smul.addr %s626, 8
        %s628 = scalar_lea.vmem [#allocation2], %s627
        // Predicated region
        $region45: #{tpu_custom_call.1} parent=43 // pred_check
          %p629 = pneg %p174
        $region46: #{tpu_custom_call.1} parent=43 // pred_check_branch
          %631 = sbr.rel (%p629) target = $region48
        $region47: #{tpu_custom_call.1} parent=43 // pred_region
          %633 = vsyncadd %s625, 0
          %s634 = smul.addr %s20, 2
          %s635 = smul.addr %s634, 4
          %s636 = scalar_lea.hbm %s6, %s635
          %s638 = sshll.u32 %s628, 4
          %s639 = int_to_ptr.vmem [resolvable:$true] %s638
          %s640 = sshll.u32 %s636, 4
          %s641 = int_to_ptr.hbm [resolvable:$true] %s640
          %643 = dma.vmem_to_hbm [thread:$0]  %s639, 128, %s641, %s625
        $region48: #{tpu_custom_call.1} parent=43 // pred_fallthru
          _
      $region44: #{tpu_custom_call.1} parent=5 // pred_fallthru
        _
      %p644 = scmp.le.s32.totalorder 2, %s15
      // Predicated region
      $region49: #{tpu_custom_call.1} parent=5 // pred_check
        %p645 = pneg %p644
      $region50: #{tpu_custom_call.1} parent=5 // pred_check_branch
        %647 = sbr.rel (%p645) target = $region52
      $region51: #{tpu_custom_call.1} parent=5 // pred_region
        %s648 = ssub.s32 %s15, 2
        // Predicated region
        $region53: #{tpu_custom_call.1} parent=51 // pred_check
          %p649 = pneg %p180
        $region54: #{tpu_custom_call.1} parent=51 // pred_check_branch
          %651 = sbr.rel (%p649) target = $region56
        $region55: #{tpu_custom_call.1} parent=51 // pred_region
          %s652 = sand.u32 %s165, 1
          %s653 = scalar_lea.sflag [#allocation3], %s652
          %s654 = sand.u32 %s165, 1
          %s655 = smul.addr %s654, 8
          %s656 = scalar_lea.vmem [#allocation2], %s655
          %658 = dma.done %s653, 128
        $region56: #{tpu_custom_call.1} parent=51 // pred_fallthru
          _
      $region52: #{tpu_custom_call.1} parent=5 // pred_fallthru
        _
    $region6: #{tpu_custom_call.1} parent=1 // loop_footer
      %s19 = sadd.s32 1, %s15
    $region7: #{tpu_custom_call.1} parent=1 // loop_footer_branch
      %14 = sbr.rel target = $region3
    $region8: #{tpu_custom_call.1} parent=1 // loop_exit
      _
    %659 = vsyncpa [#allocation3], 1
    %s660 = scalar_lea.sflag [#allocation3], 1
    %661 = vsyncpa %s660, 1

</llo_original>
